<compile_context>
chip_gen: v6e
topology: v6e:2x2x1
jax: 0.10.0
libtpu: 0.0.40
codegen_flags: <defaults>
</compile_context>

<pallas_src>
import jax
import jax.numpy as jnp
from jax.experimental import pallas as pl
from jax.experimental.pallas import tpu as pltpu


# ------------------------------ helpers --------------------------------------
def _round_up(a, b):
    return ((a + b - 1) // b) * b


def _gelu_tanh(x):
    # tanh-approximate GELU == jax.nn.gelu(x, approximate=True); tanh goes to
    # the EUP slot so it is effectively free next to the MXU work.
    c = 0.7978845608028654  # sqrt(2/pi)
    return 0.5 * x * (1.0 + jnp.tanh(c * (x + 0.044715 * (x * x * x))))


def _vmem_limit_bytes():
    # Generation-aware limit: ~85% of physical VMEM leaves headroom for
    # compiler scratch / double buffers (~54 MiB on v7x, ~109 MiB on v5e/v6e).
    try:
        return int(pltpu.get_tpu_info().vmem_capacity_bytes * 0.85)
    except Exception:
        return None  # fall back to compiler default


def _spec(shape, index_map, *, single_buffer=False):
    # Constant-index blocks are fetched exactly once across the grid, so a
    # single VMEM buffer suffices (no double buffering needed).
    if single_buffer and hasattr(pl, "Buffered"):
        try:
            return pl.BlockSpec(shape, index_map, pipeline_mode=pl.Buffered(1))
        except TypeError:
            pass
    return pl.BlockSpec(shape, index_map)


# ----------------------------- Pallas kernel ---------------------------------
def mlp_kernel(x_ref, w1_ref, b1_ref, w2_ref, b2_ref, o_ref, acc_ref):
    k = pl.program_id(1)  # hidden-chunk (reduction) axis, innermost

    @pl.when(k == 0)
    def _():
        acc_ref[...] = jnp.zeros_like(acc_ref)

    hid = jnp.dot(x_ref[...], w1_ref[...], preferred_element_type=jnp.float32)
    hid = _gelu_tanh(hid + b1_ref[...].astype(jnp.float32))
    acc_ref[...] += jnp.dot(hid.astype(w2_ref.dtype), w2_ref[...],
                            preferred_element_type=jnp.float32)

    @pl.when(k == pl.num_programs(1) - 1)
    def _():
        o_ref[...] = (acc_ref[...] + b2_ref[...].astype(jnp.float32)
                      ).astype(o_ref.dtype)


# ------------------------------- wrapper --------------------------------------
def mlp_pallas(x, w1, b1, w2, b2, *, block_rows=512, hidden_block=1024,
               pad_out_lanes=True):
    """y = GELU(x @ w1 + b1) @ w2 + b2.  Dropout p=0 -> identity (eval)."""
    *lead, c_in = x.shape
    hdim = w1.shape[1]
    c_out = w2.shape[1]

    x2 = x.reshape(-1, c_in)
    n = x2.shape[0]

    # ---- row tile: dtype-aware sublane multiple, >=2 grid steps, MXU cadence.
    sublane = max(8, 32 // jnp.dtype(x.dtype).itemsize)  # 8 f32 / 16 bf16 / 32 i8
    if n <= sublane:
        tm = _round_up(max(n, 1), sublane)
    else:
        tm = min(block_rows, _round_up(pl.cdiv(n, 2), sublane))
        if tm >= 256:
            tm = _round_up(tm, 256)  # v6e/v7x MXU M-pass cadence
    n_row = pl.cdiv(n, tm)

    # ---- hidden tile: largest multiple of 128 that divides H, capped.
    th = hdim
    if hdim > hidden_block:
        for cand in range(hidden_block, 127, -128):
            if hdim % cand == 0:
                th = cand
                break
        # TODO(synk): H with no 128-multiple divisor <= hidden_block falls back
        #             to a single full-H block (partial hidden chunks inside
        #             the reduction are not masked).
    n_hid = pl.cdiv(hdim, th)

    # ---- lane-dense output: pad fc2 out-columns to a multiple of 128 so the
    #      output stores are unmasked full-width vst; pad cols sliced off below.
    c_pad = _round_up(c_out, 128) if pad_out_lanes else c_out
    if c_pad != c_out:
        w2 = jnp.pad(w2, ((0, 0), (0, c_pad - c_out)))
        b2 = jnp.pad(b2, ((0, c_pad - c_out),))

    b1_2d = b1.reshape(1, hdim)
    b2_2d = b2.reshape(1, c_pad)

    single = n_hid == 1  # weights constant across the whole grid -> 1 buffer

    in_specs = [
        _spec((tm, c_in), lambda i, k: (i, 0)),                          # x rows
        _spec((c_in, th), lambda i, k: (0, k), single_buffer=single),    # fc1 W
        _spec((1, th), lambda i, k: (0, k), single_buffer=single),       # fc1 b
        _spec((th, c_pad), lambda i, k: (k, 0), single_buffer=single),   # fc2 W
        _spec((1, c_pad), lambda i, k: (0, 0), single_buffer=True),      # fc2 b
    ]
    out_spec = pl.BlockSpec((tm, c_pad), lambda i, k: (i, 0))

    out = pl.pallas_call(
        mlp_kernel,
        out_shape=jax.ShapeDtypeStruct((n, c_pad), x.dtype),
        grid_spec=pltpu.PrefetchScalarGridSpec(
            num_scalar_prefetch=0,
            grid=(n_row, n_hid),  # reduction (hidden) axis last
            in_specs=in_specs,
            out_specs=out_spec,
            scratch_shapes=[pltpu.VMEM((tm, c_pad), jnp.float32)],
        ),
        compiler_params=pltpu.CompilerParams(
            dimension_semantics=("parallel", "arbitrary"),
            vmem_limit_bytes=_vmem_limit_bytes(),
        ),
    )(x2, w1, b1_2d, w2, b2_2d)

    if c_pad != c_out:
        out = out[:, :c_out]
    return out.reshape(*lead, c_out)


# --------------------------- pure-JAX reference -------------------------------
def mlp_ref(x, w1, b1, w2, b2):
    h = jax.nn.gelu(x @ w1 + b1, approximate=True)
    return h @ w2 + b2


if __name__ == "__main__":
    # Module config consistent with MOFO usage: in_features=64 (dim),
    # hidden_features=256 (mlp_ratio=4), out_features=64; tokens = 8x8, batch=2.
    B, L, C, Hf = 2, 64, 64, 256

    key = jax.random.PRNGKey(0)
    k1, k2, k3, k4, k5 = jax.random.split(key, 5)
    x = jax.random.normal(k1, (B, L, C), dtype=jnp.float32)
    # PyTorch nn.Linear stores weight as (out, in); pass transposed so the
    # kernel computes x @ W + b.  (bf16 weights also work; accumulation is f32.)
    w1 = jax.random.normal(k2, (C, Hf), dtype=jnp.float32) * (C ** -0.5)
    b1 = jax.random.normal(k3, (Hf,), dtype=jnp.float32) * 0.02
    w2 = jax.random.normal(k4, (Hf, C), dtype=jnp.float32) * (Hf ** -0.5)
    b2 = jax.random.normal(k5, (C,), dtype=jnp.float32) * 0.02

    # Fused path: N=128 tokens -> 2 row tiles (both TensorCores busy on v7x),
    # single hidden block.
    out = jax.block_until_ready(mlp_pallas(x, w1, b1, w2, b2))
    ref = mlp_ref(x, w1, b1, w2, b2)
    assert out.shape == (B, L, C)
    assert jnp.allclose(out, ref, rtol=1e-4, atol=1e-4), "mismatch (fused path)"

    # Partial-row-block + hidden-chunked accumulator path: N=111 does not
    # divide the row tile and hidden_block=128 forces two reduction steps.
    x_odd = jax.random.normal(k1, (3, 37, C), dtype=jnp.float32)
    out2 = jax.block_until_ready(
        mlp_pallas(x_odd, w1, b1, w2, b2, hidden_block=128))
    ref2 = mlp_ref(x_odd, w1, b1, w2, b2)
    assert out2.shape == (3, 37, C)
    assert jnp.allclose(out2, ref2, rtol=1e-4, atol=1e-4), "mismatch (chunked path)"

    print("KERNEL_OK")
</pallas_src>

<mosaic_0001>
module attributes {stable_mosaic.version = 11 : i64} {
  func.func @mlp_kernel(%arg0: i32, %arg1: i32, %arg2: memref<64x64xf32, #tpu.memory_space<vmem>>, %arg3: memref<64x256xf32, #tpu.memory_space<vmem>>, %arg4: memref<1x256xf32, #tpu.memory_space<vmem>>, %arg5: memref<256x128xf32, #tpu.memory_space<vmem>>, %arg6: memref<1x128xf32, #tpu.memory_space<vmem>>, %arg7: memref<64x128xf32, #tpu.memory_space<vmem>>, %arg8: memref<64x128xf32, #tpu.memory_space<vmem>>) attributes {dimension_semantics = [#tpu.dimension_semantics<parallel>, #tpu.dimension_semantics<arbitrary>], iteration_bounds = array<i64: 2, 1>, scalar_prefetch = 0 : i64, scratch_operands = 1 : i64, tpu.core_type = #tpu.core_type<tc>, window_params = [{transform_indices = @transform_0, window_bounds = array<i64: 64, 64>}, {pipeline_mode = #tpu.pipeline_mode<synchronous>, transform_indices = @transform_1, window_bounds = array<i64: 64, 256>}, {pipeline_mode = #tpu.pipeline_mode<synchronous>, transform_indices = @transform_2, window_bounds = array<i64: 1, 256>}, {pipeline_mode = #tpu.pipeline_mode<synchronous>, transform_indices = @transform_3, window_bounds = array<i64: 256, 128>}, {pipeline_mode = #tpu.pipeline_mode<synchronous>, transform_indices = @transform_4, window_bounds = array<i64: 1, 128>}, {transform_indices = @transform_5, window_bounds = array<i64: 64, 128>}]} {
    %c0_i32 = arith.constant 0 : i32
    %0 = arith.cmpi eq, %arg1, %c0_i32 : i32
    %1 = arith.extui %0 : i1 to i32
    %c0_i32_0 = arith.constant 0 : i32
    %2 = arith.cmpi ne, %1, %c0_i32_0 : i32
    scf.if %2 {
      %cst_19 = arith.constant 0.000000e+00 : f32
      %30 = vector.broadcast %cst_19 : f32 to vector<64x128xf32>
      %c0_20 = arith.constant 0 : index
      %c0_21 = arith.constant 0 : index
      %31 = vector.load %arg8[%c0_20, %c0_21] : memref<64x128xf32, #tpu.memory_space<vmem>>, vector<64x128xf32>
      tpu.vector_store %arg8[%c0_20, %c0_21], %30 {strides = array<i32>} : memref<64x128xf32, #tpu.memory_space<vmem>>, vector<64x128xf32>,
    } else {
    }
    %c0 = arith.constant 0 : index
    %c0_1 = arith.constant 0 : index
    %3 = vector.load %arg2[%c0, %c0_1] : memref<64x64xf32, #tpu.memory_space<vmem>>, vector<64x64xf32>
    %c0_2 = arith.constant 0 : index
    %c0_3 = arith.constant 0 : index
    %4 = vector.load %arg3[%c0_2, %c0_3] : memref<64x256xf32, #tpu.memory_space<vmem>>, vector<64x256xf32>
    %cst = arith.constant dense<0.000000e+00> : vector<64x256xf32>
    %5 = tpu.matmul %3, %4, %cst {dimension_numbers = #tpu.dot_dimension_numbers<[1], [0], [0], [1], [0, 0, 1, 1], [], []>} : vector<64x64xf32>, vector<64x256xf32>, vector<64x256xf32> -> vector<64x256xf32>
    %c0_4 = arith.constant 0 : index
    %c0_5 = arith.constant 0 : index
    %6 = vector.load %arg4[%c0_4, %c0_5] : memref<1x256xf32, #tpu.memory_space<vmem>>, vector<1x256xf32>
    %7 = vector.broadcast %6 : vector<1x256xf32> to vector<64x256xf32>
    %8 = arith.addf %5, %7 : vector<64x256xf32>
    %cst_6 = arith.constant 5.000000e-01 : f32
    %9 = vector.broadcast %cst_6 : f32 to vector<64x256xf32>
    %10 = arith.mulf %9, %8 : vector<64x256xf32>
    %11 = arith.mulf %8, %8 : vector<64x256xf32>
    %12 = arith.mulf %11, %8 : vector<64x256xf32>
    %cst_7 = arith.constant 4.471500e-02 : f32
    %13 = vector.broadcast %cst_7 : f32 to vector<64x256xf32>
    %14 = arith.mulf %13, %12 : vector<64x256xf32>
    %15 = arith.addf %8, %14 : vector<64x256xf32>
    %cst_8 = arith.constant 0.797884583 : f32
    %16 = vector.broadcast %cst_8 : f32 to vector<64x256xf32>
    %17 = arith.mulf %16, %15 : vector<64x256xf32>
    %18 = math.tanh %17 : vector<64x256xf32>
    %cst_9 = arith.constant 1.000000e+00 : f32
    %19 = vector.broadcast %cst_9 : f32 to vector<64x256xf32>
    %20 = arith.addf %19, %18 : vector<64x256xf32>
    %21 = arith.mulf %10, %20 : vector<64x256xf32>
    %c0_10 = arith.constant 0 : index
    %c0_11 = arith.constant 0 : index
    %22 = vector.load %arg8[%c0_10, %c0_11] : memref<64x128xf32, #tpu.memory_space<vmem>>, vector<64x128xf32>
    %c0_12 = arith.constant 0 : index
    %c0_13 = arith.constant 0 : index
    %23 = vector.load %arg5[%c0_12, %c0_13] : memref<256x128xf32, #tpu.memory_space<vmem>>, vector<256x128xf32>
    %cst_14 = arith.constant dense<0.000000e+00> : vector<64x128xf32>
    %24 = tpu.matmul %21, %23, %cst_14 {dimension_numbers = #tpu.dot_dimension_numbers<[1], [0], [0], [1], [0, 0, 1, 1], [], []>} : vector<64x256xf32>, vector<256x128xf32>, vector<64x128xf32> -> vector<64x128xf32>
    %25 = arith.addf %22, %24 : vector<64x128xf32>
    %c0_15 = arith.constant 0 : index
    %c0_16 = arith.constant 0 : index
    %26 = vector.load %arg8[%c0_15, %c0_16] : memref<64x128xf32, #tpu.memory_space<vmem>>, vector<64x128xf32>
    tpu.vector_store %arg8[%c0_15, %c0_16], %25 {strides = array<i32>} : memref<64x128xf32, #tpu.memory_space<vmem>>, vector<64x128xf32>,
    %c0_i32_17 = arith.constant 0 : i32
    %27 = arith.cmpi eq, %arg1, %c0_i32_17 : i32
    %28 = arith.extui %27 : i1 to i32
    %c0_i32_18 = arith.constant 0 : i32
    %29 = arith.cmpi ne, %28, %c0_i32_18 : i32
    scf.if %29 {
      %c0_19 = arith.constant 0 : index
      %c0_20 = arith.constant 0 : index
      %30 = vector.load %arg8[%c0_19, %c0_20] : memref<64x128xf32, #tpu.memory_space<vmem>>, vector<64x128xf32>
      %c0_21 = arith.constant 0 : index
      %c0_22 = arith.constant 0 : index
      %31 = vector.load %arg6[%c0_21, %c0_22] : memref<1x128xf32, #tpu.memory_space<vmem>>, vector<1x128xf32>
      %32 = vector.broadcast %31 : vector<1x128xf32> to vector<64x128xf32>
      %33 = arith.addf %30, %32 : vector<64x128xf32>
      %c0_23 = arith.constant 0 : index
      %c0_24 = arith.constant 0 : index
      %34 = vector.load %arg7[%c0_23, %c0_24] : memref<64x128xf32, #tpu.memory_space<vmem>>, vector<64x128xf32>
      tpu.vector_store %arg7[%c0_23, %c0_24], %33 {strides = array<i32>} : memref<64x128xf32, #tpu.memory_space<vmem>>, vector<64x128xf32>,
    } else {
    }
    return
  }
  func.func @transform_0(%arg0: i32, %arg1: i32) -> (i32, i32) {
    %c0_i32 = arith.constant 0 : i32
    %c0_i32_0 = arith.constant 0 : i32
    return %arg0, %c0_i32 : i32, i32
  }
  func.func @transform_1(%arg0: i32, %arg1: i32) -> (i32, i32) {
    %c0_i32 = arith.constant 0 : i32
    %c0_i32_0 = arith.constant 0 : i32
    return %c0_i32, %arg1 : i32, i32
  }
  func.func @transform_2(%arg0: i32, %arg1: i32) -> (i32, i32) {
    %c0_i32 = arith.constant 0 : i32
    %c0_i32_0 = arith.constant 0 : i32
    return %c0_i32, %arg1 : i32, i32
  }
  func.func @transform_3(%arg0: i32, %arg1: i32) -> (i32, i32) {
    %c0_i32 = arith.constant 0 : i32
    %c0_i32_0 = arith.constant 0 : i32
    return %arg1, %c0_i32 : i32, i32
  }
  func.func @transform_4(%arg0: i32, %arg1: i32) -> (i32, i32) {
    %c0_i32 = arith.constant 0 : i32
    %c0_i32_0 = arith.constant 0 : i32
    %c0_i32_1 = arith.constant 0 : i32
    return %c0_i32, %c0_i32_0 : i32, i32
  }
  func.func @transform_5(%arg0: i32, %arg1: i32) -> (i32, i32) {
    %c0_i32 = arith.constant 0 : i32
    %c0_i32_0 = arith.constant 0 : i32
    return %arg0, %c0_i32 : i32, i32
  }
}

</mosaic_0001>

<llo_original>
// kernel: tpu_custom_call.1
$region0: #{tpu_custom_call.1}
  #allocation0 [shape = 'u32[]', space=smem, size = 0x4, offset = 0x4, fixed_abs, tag = 'smem constant byte address 0x4 - core index']
  #allocation1 [shape = 'u32[144,128]{1,0:T(1,128)}', space=vmem, size = 0x12000, scoped, tag = 'internal scratch']
  #allocation2 [shape = 'f32[64,128]{1,0:T(8,128)}', space=vmem, size = 0x8000, scoped, tag = 'scratch operand']
  %s0 = inlined_call_operand.vmem [shape: f32[128,64], index: 0, kind: input, shape index: {}]
  %s1 = inlined_call_operand.vmem [shape: f32[64,256], index: 1, kind: input, shape index: {}]
  %s2 = inlined_call_operand.vmem [shape: f32[1,256], index: 2, kind: input, shape index: {}]
  %s3 = inlined_call_operand.hbm [shape: f32[256,128], index: 3, kind: input, shape index: {}]
  %s4 = inlined_call_operand.vmem [shape: f32[1,128], index: 4, kind: input, shape index: {}]
  %s5 = inlined_call_operand.hbm [shape: f32[128,128], index: 5, kind: output, shape index: {}]
  %s6 = sld [smem:[#allocation0]]
  $region65: #{tpu_custom_call.1} parent=0
    _
  %s8 = ssub.s32 1, %s6
  %s9 = scalar_select 0, %s8, %s6
  $region1: #{tpu_custom_call.1} parent=0
    #allocation3 [shape = 'u8[131072]{0}', space=vmem, size = 0x20000, scoped, tag = 'input window, operand 3, single buffered']
    #allocation4 [shape = 's32[2]{0}', space=sflag, size = 0x8, scoped, tag = 'scoped memory for tpu_custom_call.1']
    #allocation5 [shape = 's32[2]{0}', space=sflag, size = 0x8, scoped, tag = 'scoped memory for tpu_custom_call.1']
    #allocation6 [shape = 'u8[65536]{0}', space=vmem, size = 0x10000, scoped, tag = 'output window, operand 0']
    %10 = vsyncpa [#allocation4], 0
    %11 = vsyncpa [#allocation5], 0
    %s12 = scalar_lea.sflag [#allocation5], 1
    %13 = vsyncpa %s12, 0
    loop: start=0, step=1, limit=4
    $region2: #{tpu_custom_call.1} parent=1 // loop_pre_header
      _
    $region3: #{tpu_custom_call.1} parent=1 // loop_header
      %s15 = sphi 0, %s19
      %p16 = scmp.ge.s32.totalorder %s15, 4
      %s22 = sphi 0, %s34
      %s23 = sphi 0, %s30
      %s24 = sphi 0, %s22
      %s25 = sphi 0, %s23
      %s26 = sphi 0, %s24
      %s27 = sphi 0, %s25
      %s37 = sphi 0, %s39
      %s40 = sphi 0, %s37
      %s41 = sphi 0, %s40
      %s57 = sphi 0, %s41
      %s63 = sphi 0, %s65
      %s66 = sphi 0, %s63
      %s67 = sphi 0, %s66
      %s83 = sphi 0, %s67
      %s89 = sphi 0, %s91
      %s92 = sphi 0, %s89
      %s93 = sphi 0, %s92
      %s109 = sphi 0, %s93
      %s115 = sphi 0, %s117
      %s118 = sphi 0, %s115
      %s119 = sphi 0, %s118
      %s135 = sphi 0, %s119
      %s139 = sphi 0, %s139
      %s141 = sphi 0, %s139
      %s142 = sphi 0, %s141
      %s156 = sphi 0, %s142
      %s162 = sphi 0, %s164
      %s165 = sphi 0, %s162
      %s166 = sphi 0, %s165
      %s182 = sphi 0, %s166
    $region4: #{tpu_custom_call.1} parent=1 // loop_header_branch
      %18 = sbr.rel (%p16) target = $region8
    $region5: #{tpu_custom_call.1} parent=1 // loop_body
      %s20 = ssub.s32 %s15, 1
      %s21 = ssub.s32 %s15, 2
      %s28 = sadd.s32 1, %s23
      %p29 = scmp.ge.s32.totalorder %s28, 1
      %s30 = scalar_select %p29, 0, %s28
      %s31 = sadd.s32 1, %s22
      %s32 = scalar_select %p29, %s31, %s22
      %p33 = scmp.ge.s32.totalorder %s32, 2
      %s34 = scalar_select %p33, 0, %s32
      %s35 = ssub.s32 %s22, %s34
      %p36 = scmp.eq.s32.totalorder %s35, 0
      %s38 = sadd.s32 %s37, 1
      %s39 = scalar_select %p36, %s37, %s38
      %p42 = pneg %p36
      %p43 = scmp.eq.s32.totalorder %s15, 1
      %p44 = por %p42, %p43
      %p45 = scmp.ne.s32.totalorder %s37, %s40
      %p46 = scmp.eq.s32.totalorder %s15, 0
      %p47 = por %p45, %p46
      %p48 = scmp.ne.s32.totalorder %s37, %s40
      %p49 = scmp.eq.s32.totalorder %s20, 1
      %p50 = por %p48, %p49
      %p51 = scmp.ne.s32.totalorder %s40, %s41
      %p52 = scmp.eq.s32.totalorder %s20, 0
      %p53 = por %p51, %p52
      %p54 = scmp.ne.s32.totalorder %s40, %s41
      %p55 = scmp.eq.s32.totalorder %s21, 1
      %p56 = por %p54, %p55
      %p58 = scmp.ne.s32.totalorder %s41, %s57
      %p59 = scmp.eq.s32.totalorder %s21, 0
      %p60 = por %p58, %p59
      %s61 = ssub.s32 %s23, %s30
      %p62 = scmp.eq.s32.totalorder %s61, 0
      %s64 = sadd.s32 %s63, 1
      %s65 = scalar_select %p62, %s63, %s64
      %p68 = pneg %p62
      %p69 = scmp.eq.s32.totalorder %s15, 1
      %p70 = por %p68, %p69
      %p71 = scmp.ne.s32.totalorder %s63, %s66
      %p72 = scmp.eq.s32.totalorder %s15, 0
      %p73 = por %p71, %p72
      %p74 = scmp.ne.s32.totalorder %s63, %s66
      %p75 = scmp.eq.s32.totalorder %s20, 1
      %p76 = por %p74, %p75
      %p77 = scmp.ne.s32.totalorder %s66, %s67
      %p78 = scmp.eq.s32.totalorder %s20, 0
      %p79 = por %p77, %p78
      %p80 = scmp.ne.s32.totalorder %s66, %s67
      %p81 = scmp.eq.s32.totalorder %s21, 1
      %p82 = por %p80, %p81
      %p84 = scmp.ne.s32.totalorder %s67, %s83
      %p85 = scmp.eq.s32.totalorder %s21, 0
      %p86 = por %p84, %p85
      %s87 = ssub.s32 %s23, %s30
      %p88 = scmp.eq.s32.totalorder %s87, 0
      %s90 = sadd.s32 %s89, 1
      %s91 = scalar_select %p88, %s89, %s90
      %p94 = pneg %p88
      %p95 = scmp.eq.s32.totalorder %s15, 1
      %p96 = por %p94, %p95
      %p97 = scmp.ne.s32.totalorder %s89, %s92
      %p98 = scmp.eq.s32.totalorder %s15, 0
      %p99 = por %p97, %p98
      %p100 = scmp.ne.s32.totalorder %s89, %s92
      %p101 = scmp.eq.s32.totalorder %s20, 1
      %p102 = por %p100, %p101
      %p103 = scmp.ne.s32.totalorder %s92, %s93
      %p104 = scmp.eq.s32.totalorder %s20, 0
      %p105 = por %p103, %p104
      %p106 = scmp.ne.s32.totalorder %s92, %s93
      %p107 = scmp.eq.s32.totalorder %s21, 1
      %p108 = por %p106, %p107
      %p110 = scmp.ne.s32.totalorder %s93, %s109
      %p111 = scmp.eq.s32.totalorder %s21, 0
      %p112 = por %p110, %p111
      %s113 = ssub.s32 %s23, %s30
      %p114 = scmp.eq.s32.totalorder %s113, 0
      %s116 = sadd.s32 %s115, 1
      %s117 = scalar_select %p114, %s115, %s116
      %p120 = pneg %p114
      %p121 = scmp.eq.s32.totalorder %s15, 1
      %p122 = por %p120, %p121
      %p123 = scmp.ne.s32.totalorder %s115, %s118
      %p124 = scmp.eq.s32.totalorder %s15, 0
      %p125 = por %p123, %p124
      %p126 = scmp.ne.s32.totalorder %s115, %s118
      %p127 = scmp.eq.s32.totalorder %s20, 1
      %p128 = por %p126, %p127
      %p129 = scmp.ne.s32.totalorder %s118, %s119
      %p130 = scmp.eq.s32.totalorder %s20, 0
      %p131 = por %p129, %p130
      %p132 = scmp.ne.s32.totalorder %s118, %s119
      %p133 = scmp.eq.s32.totalorder %s21, 1
      %p134 = por %p132, %p133
      %p136 = scmp.ne.s32.totalorder %s119, %s135
      %p137 = scmp.eq.s32.totalorder %s21, 0
      %p138 = por %p136, %p137
      %s140 = sadd.s32 %s139, 1
      %p143 = scmp.eq.s32.totalorder %s15, 1
      %p144 = scmp.ne.s32.totalorder %s139, %s141
      %p145 = scmp.eq.s32.totalorder %s15, 0
      %p146 = por %p144, %p145
      %p147 = scmp.ne.s32.totalorder %s139, %s141
      %p148 = scmp.eq.s32.totalorder %s20, 1
      %p149 = por %p147, %p148
      %p150 = scmp.ne.s32.totalorder %s141, %s142
      %p151 = scmp.eq.s32.totalorder %s20, 0
      %p152 = por %p150, %p151
      %p153 = scmp.ne.s32.totalorder %s141, %s142
      %p154 = scmp.eq.s32.totalorder %s21, 1
      %p155 = por %p153, %p154
      %p157 = scmp.ne.s32.totalorder %s142, %s156
      %p158 = scmp.eq.s32.totalorder %s21, 0
      %p159 = por %p157, %p158
      %s160 = ssub.s32 %s22, %s34
      %p161 = scmp.eq.s32.totalorder %s160, 0
      %s163 = sadd.s32 %s162, 1
      %s164 = scalar_select %p161, %s162, %s163
      %p167 = pneg %p161
      %p168 = scmp.eq.s32.totalorder %s15, 1
      %p169 = por %p167, %p168
      %p170 = scmp.ne.s32.totalorder %s162, %s165
      %p171 = scmp.eq.s32.totalorder %s15, 0
      %p172 = por %p170, %p171
      %p173 = scmp.ne.s32.totalorder %s162, %s165
      %p174 = scmp.eq.s32.totalorder %s20, 1
      %p175 = por %p173, %p174
      %p176 = scmp.ne.s32.totalorder %s165, %s166
      %p177 = scmp.eq.s32.totalorder %s20, 0
      %p178 = por %p176, %p177
      %p179 = scmp.ne.s32.totalorder %s165, %s166
      %p180 = scmp.eq.s32.totalorder %s21, 1
      %p181 = por %p179, %p180
      %p183 = scmp.ne.s32.totalorder %s166, %s182
      %p184 = scmp.eq.s32.totalorder %s21, 0
      %p185 = por %p183, %p184
      %p186 = scmp.le.s32.totalorder 1, %s15
      %p187 = scmp.lt.s32.totalorder %s15, 3
      %p188 = pnand %p186, %p187
      %p189 = pneg %p188
      // Predicated region
      $region9: #{tpu_custom_call.1} parent=5 // pred_check
        _
      $region10: #{tpu_custom_call.1} parent=5 // pred_check_branch
        %191 = sbr.rel (%p188) target = $region12
      $region11: #{tpu_custom_call.1} parent=5 // pred_region
        %s192 = ssub.s32 %s15, 1
        // Predicated region
        $region13: #{tpu_custom_call.1} parent=11 // pred_check
          %p193 = pneg %p79
        $region14: #{tpu_custom_call.1} parent=11 // pred_check_branch
          %195 = sbr.rel (%p193) target = $region16
        $region15: #{tpu_custom_call.1} parent=11 // pred_region
          %s196 = smul.u32 2, %s25
          %p197 = scmp.lt.s32.totalorder %s196, 1
          %s198 = scalar_select %p197, %s196, 1
          %s199 = smul.addr %s198, 8
          %s200 = scalar_lea.vmem %s1, %s199
          %s201 = smul.u32 2, %s25
        $region16: #{tpu_custom_call.1} parent=11 // pred_fallthru
          _
        // Predicated region
        $region17: #{tpu_custom_call.1} parent=11 // pred_check
          %p202 = pneg %p105
        $region18: #{tpu_custom_call.1} parent=11 // pred_check_branch
          %204 = sbr.rel (%p202) target = $region20
        $region19: #{tpu_custom_call.1} parent=11 // pred_region
          %s205 = smul.u32 2, %s25
          %p206 = scmp.lt.s32.totalorder %s205, 1
          %s207 = scalar_select %p206, %s205, 1
          %s208 = scalar_lea.vmem %s2, %s207
          %s209 = smul.u32 2, %s25
        $region20: #{tpu_custom_call.1} parent=11 // pred_fallthru
          _
        // Predicated region
        $region21: #{tpu_custom_call.1} parent=11 // pred_check
          %p210 = pneg %p131
        $region22: #{tpu_custom_call.1} parent=11 // pred_check_branch
          %212 = sbr.rel (%p210) target = $region24
        $region23: #{tpu_custom_call.1} parent=11 // pred_region
          %s213 = smul.u32 32, %s25
          %s215 = ssub.s32 4096, 4096
          %216 = vsyncadd [#allocation4], %s215
          %s217 = smul.addr %s213, 128
          %s218 = scalar_lea.hbm %s3, %s217
          %s219 = sshll.u32 [#allocation3], 4
          %s220 = int_to_ptr.vmem [resolvable:$true] %s219
          %225 = dma.hbm_to_vmem [thread:$0]  %s218, 4096, %s220, [#allocation4], 128, 128, 8
        $region24: #{tpu_custom_call.1} parent=11 // pred_fallthru
          _
        // Predicated region
        $region25: #{tpu_custom_call.1} parent=11 // pred_check
          %p226 = pneg %p152
        $region26: #{tpu_custom_call.1} parent=11 // pred_check_branch
          %228 = sbr.rel (%p226) target = $region28
        $region27: #{tpu_custom_call.1} parent=11 // pred_region
          _
        $region28: #{tpu_custom_call.1} parent=11 // pred_fallthru
          _
      $region12: #{tpu_custom_call.1} parent=5 // pred_fallthru
        _
      %p229 = scmp.lt.s32.totalorder %s15, 2
      // Predicated region
      $region29: #{tpu_custom_call.1} parent=5 // pred_check
        %p230 = pneg %p229
      $region30: #{tpu_custom_call.1} parent=5 // pred_check_branch
        %232 = sbr.rel (%p230) target = $region32
      $region31: #{tpu_custom_call.1} parent=5 // pred_region
        // Predicated region
        $region33: #{tpu_custom_call.1} parent=31 // pred_check
          %p233 = pneg %p47
        $region34: #{tpu_custom_call.1} parent=31 // pred_check_branch
          %235 = sbr.rel (%p233) target = $region36
        $region35: #{tpu_custom_call.1} parent=31 // pred_region
          %s236 = smul.u32 8, %s22
          %p237 = scmp.lt.s32.totalorder %s236, 15
          %s238 = scalar_select %p237, %s236, 15
          %s239 = smul.addr %s238, 8
          %s240 = scalar_lea.vmem %s0, %s239
          %s241 = smul.u32 8, %s22
        $region36: #{tpu_custom_call.1} parent=31 // pred_fallthru
          _
      $region32: #{tpu_custom_call.1} parent=5 // pred_fallthru
        _
      %p242 = scmp.le.s32.totalorder 1, %s15
      %p243 = scmp.lt.s32.totalorder %s15, 3
      %p244 = pnand %p242, %p243
      %p245 = pneg %p244
      // Predicated region
      $region37: #{tpu_custom_call.1} parent=5 // pred_check
        _
      $region38: #{tpu_custom_call.1} parent=5 // pred_check_branch
        %247 = sbr.rel (%p244) target = $region40
      $region39: #{tpu_custom_call.1} parent=5 // pred_region
        %s248 = ssub.s32 %s15, 1
        // Predicated region
        $region41: #{tpu_custom_call.1} parent=39 // pred_check
          %p249 = pneg %p131
        $region42: #{tpu_custom_call.1} parent=39 // pred_check_branch
          %251 = sbr.rel (%p249) target = $region44
        $region43: #{tpu_custom_call.1} parent=39 // pred_region
          %252 = dma.done [#allocation4], 4096
        $region44: #{tpu_custom_call.1} parent=39 // pred_fallthru
          _
        %s253 = smul.u32 8, %s24
        %p254 = scmp.lt.s32.totalorder %s253, 15
        %s255 = scalar_select %p254, %s253, 15
        %s256 = smul.addr %s255, 8
        %s257 = scalar_lea.vmem %s0, %s256
        %p258 = pneg %p53
        %p259 = pneg %p50
        %s260 = smul.u32 2, %s25
        %p261 = scmp.lt.s32.totalorder %s260, 1
        %s262 = scalar_select %p261, %s260, 1
        %s263 = smul.addr %s262, 8
        %s264 = scalar_lea.vmem %s1, %s263
        %p265 = pneg %p79
        %p266 = pneg %p76
        %s267 = smul.u32 2, %s25
        %p268 = scmp.lt.s32.totalorder %s267, 1
        %s269 = scalar_select %p268, %s267, 1
        %s270 = scalar_lea.vmem %s2, %s269
        %p271 = pneg %p105
        %p272 = pneg %p102
        %p273 = pneg %p131
        %p274 = pneg %p128
        %p275 = pneg %p152
        %p276 = pneg %p149
        %p277 = pneg %p178
        %p278 = pneg %p175
        %s279 = sand.u32 %s165, 1
        %s280 = scalar_lea.sflag [#allocation5], %s279
        %s281 = sand.u32 %s165, 1
        %s282 = smul.addr %s281, 64
        %s283 = scalar_lea.vmem [#allocation6], %s282
        %s284 = smul.u32 8, %s24
        %p285 = scmp.lt.s32.totalorder %s284, 15
        %s286 = scalar_select %p285, %s284, 15
        %s287 = smul.addr %s286, 8
        %s288 = scalar_lea.vmem %s0, %s287
        %s289 = smul.u32 8, %s24
        %s290 = smul.u32 2, %s25
        %p291 = scmp.lt.s32.totalorder %s290, 1
        %s292 = scalar_select %p291, %s290, 1
        %s293 = smul.addr %s292, 8
        %s294 = scalar_lea.vmem %s1, %s293
        %s295 = smul.u32 2, %s25
        %s296 = smul.u32 2, %s25
        %p297 = scmp.lt.s32.totalorder %s296, 1
        %s298 = scalar_select %p297, %s296, 1
        %s299 = scalar_lea.vmem %s2, %s298
        %s300 = smul.u32 2, %s25
        %s301 = smul.u32 32, %s25
        %s302 = smul.u32 8, %s24
        %p303 = scmp.eq.s32.totalorder %s25, 0
        // Predicated region
        $region45: #{tpu_custom_call.1} parent=39 // pred_check
          %p304 = pneg %p303
        $region46: #{tpu_custom_call.1} parent=39 // pred_check_branch
          %306 = sbr.rel (%p304) target = $region48
        $region47: #{tpu_custom_call.1} parent=39 // pred_region
          %307 = vst [vmem:[#allocation2] sm:$0xff] 0.0
          %308 = vst [vmem:[#allocation2 + $0x8] sm:$0xff] 0.0
          %309 = vst [vmem:[#allocation2 + $0x10] sm:$0xff] 0.0
          %310 = vst [vmem:[#allocation2 + $0x18] sm:$0xff] 0.0
          %311 = vst [vmem:[#allocation2 + $0x20] sm:$0xff] 0.0
          %312 = vst [vmem:[#allocation2 + $0x28] sm:$0xff] 0.0
          %313 = vst [vmem:[#allocation2 + $0x30] sm:$0xff] 0.0
          %314 = vst [vmem:[#allocation2 + $0x38] sm:$0xff] 0.0
        $region48: #{tpu_custom_call.1} parent=39 // pred_fallthru
          _
        %v315 = vld [vmem:[%s288] sm:$0xff]
        %v316 = vld [vmem:[%s288 + $0x8] sm:$0xff]
        %v317 = vld [vmem:[%s288 + $0x10] sm:$0xff]
        %v318 = vld [vmem:[%s288 + $0x18] sm:$0xff]
        %v319 = vld [vmem:[%s288 + $0x20] sm:$0xff]
        %v320 = vld [vmem:[%s288 + $0x28] sm:$0xff]
        %v321 = vld [vmem:[%s288 + $0x30] sm:$0xff]
        %v322 = vld [vmem:[%s288 + $0x38] sm:$0xff]
        %v323 = vld [vmem:[%s294] sm:$0xff]
        %v324 = vld [vmem:[%s294 + $0x8] sm:$0xff]
        %v325 = vld [vmem:[%s294 + $0x10] sm:$0xff]
        %v326 = vld [vmem:[%s294 + $0x18] sm:$0xff]
        %v327 = vld [vmem:[%s294 + $0x20] sm:$0xff]
        %v328 = vld [vmem:[%s294 + $0x28] sm:$0xff]
        %v329 = vld [vmem:[%s294 + $0x30] sm:$0xff]
        %v330 = vld [vmem:[%s294 + $0x38] sm:$0xff]
        %v331 = vld [vmem:[%s294 + $0x40] sm:$0xff]
        %v332 = vld [vmem:[%s294 + $0x48] sm:$0xff]
        %v333 = vld [vmem:[%s294 + $0x50] sm:$0xff]
        %v334 = vld [vmem:[%s294 + $0x58] sm:$0xff]
        %v335 = vld [vmem:[%s294 + $0x60] sm:$0xff]
        %v336 = vld [vmem:[%s294 + $0x68] sm:$0xff]
        %v337 = vld [vmem:[%s294 + $0x70] sm:$0xff]
        %v338 = vld [vmem:[%s294 + $0x78] sm:$0xff]
        %v339 = vld [vmem:[%s299] sm:$0x3]
        %v341 = vlaneseq
        %v342 = vshrl.u32 %v341, 7
        %v343 = vsub.s32 0, %v342
        %v344 = vrot.slane %v339, %v343
        %v345 = vlaneseq
        %v346 = vshrl.u32 %v345, 7
        %v347 = vsub.s32 1, %v346
        %v348 = vrot.slane %v339, %v347
        %vm351 = vcmask 523264
        %v353 = vsel %vm351, %v315, 0
        %v356 = vsel %vm351, %v316, 0
        %v359 = vsel %vm351, %v317, 0
        %v362 = vsel %vm351, %v318, 0
        %v365 = vsel %vm351, %v319, 0
        %v368 = vsel %vm351, %v320, 0
        %v371 = vsel %vm351, %v321, 0
        %v374 = vsel %vm351, %v322, 0
        %376 = vmatprep.subr.mxu0 0.0
        %377 = vmatpush1.msra.mxu0 0.0
        %378 = vmatprep.subr.mxu0 0.0
        %379 = vmatpush1.msra.mxu0 0.0
        %380 = vmatprep.subr.mxu0 0.0
        %381 = vmatpush1.msra.mxu0 0.0
        %382 = vmatprep.subr.mxu0 0.0
        %383 = vmatpush1.msra.mxu0 0.0
        %384 = vmatprep.subr.mxu0 0.0
        %385 = vmatpush1.msra.mxu0 0.0
        %386 = vmatprep.subr.mxu0 0.0
        %387 = vmatpush1.msra.mxu0 0.0
        %388 = vmatprep.subr.mxu0 0.0
        %389 = vmatpush1.msra.mxu0 0.0
        %390 = vmatprep.subr.mxu0 0.0
        %391 = vmatpush1.msra.mxu0 0.0
        %392 = vmatprep.subr.mxu0 %v338
        %393 = vmatpush1.msra.mxu0 %v337
        %394 = vmatprep.subr.mxu0 %v336
        %395 = vmatpush1.msra.mxu0 %v335
        %396 = vmatprep.subr.mxu0 %v334
        %397 = vmatpush1.msra.mxu0 %v333
        %398 = vmatprep.subr.mxu0 %v332
        %399 = vmatpush1.msra.mxu0 %v331
        %400 = vmatprep.subr.mxu0 %v330
        %401 = vmatpush1.msra.mxu0 %v329
        %402 = vmatprep.subr.mxu0 %v328
        %403 = vmatpush1.msra.mxu0 %v327
        %404 = vmatprep.subr.mxu0 %v326
        %405 = vmatpush1.msra.mxu0 %v325
        %406 = vmatprep.subr.mxu0 %v324
        %407 = vmatpush1.msra.mxu0 %v323
        %408 = vmatprep.subr.mxu0 0.0
        %409 = vmatpush2.msra.mxu0 0.0
        %410 = vmatprep.subr.mxu0 0.0
        %411 = vmatpush2.msra.mxu0 0.0
        %412 = vmatprep.subr.mxu0 0.0
        %413 = vmatpush2.msra.mxu0 0.0
        %414 = vmatprep.subr.mxu0 0.0
        %415 = vmatpush2.msra.mxu0 0.0
        %416 = vmatprep.subr.mxu0 0.0
        %417 = vmatpush2.msra.mxu0 0.0
        %418 = vmatprep.subr.mxu0 0.0
        %419 = vmatpush2.msra.mxu0 0.0
        %420 = vmatprep.subr.mxu0 0.0
        %421 = vmatpush2.msra.mxu0 0.0
        %422 = vmatprep.subr.mxu0 0.0
        %423 = vmatpush2.msra.mxu0 0.0
        %424 = vmatprep.subr.mxu0 0.0
        %425 = vmatpush2.msra.mxu0 0.0
        %426 = vmatprep.subr.mxu0 0.0
        %427 = vmatpush2.msra.mxu0 0.0
        %428 = vmatprep.subr.mxu0 0.0
        %429 = vmatpush2.msra.mxu0 0.0
        %430 = vmatprep.subr.mxu0 0.0
        %431 = vmatpush2.msra.mxu0 0.0
        %432 = vmatprep.subr.mxu0 0.0
        %433 = vmatpush2.msra.mxu0 0.0
        %434 = vmatprep.subr.mxu0 0.0
        %435 = vmatpush2.msra.mxu0 0.0
        %436 = vmatprep.subr.mxu0 0.0
        %437 = vmatpush2.msra.mxu0 0.0
        %438 = vmatprep.subr.mxu0 0.0
        %439 = vmatpush2.msra.mxu0 0.0
        %440 = vmatprep.mubr.f32.mxu0 0.0
        %441 = vmatmul.mubr.f32.gmra.mxu0 %v353
        %v442 = vpop.f32.mrf.mxu0
        %v443 = vadd.f32 %v344, %v442
        %v444 = vpop.f32.mrf.mxu0
        %v445 = vadd.f32 %v348, %v444
        %446 = vmatprep.mubr.f32.mxu0 0.0
        %447 = vmatmul.mubr.f32.gmra.mxu0 %v356
        %v448 = vpop.f32.mrf.mxu0
        %v449 = vadd.f32 %v344, %v448
        %v450 = vpop.f32.mrf.mxu0
        %v451 = vadd.f32 %v348, %v450
        %452 = vmatprep.mubr.f32.mxu0 0.0
        %453 = vmatmul.mubr.f32.gmra.mxu0 %v359
        %v454 = vpop.f32.mrf.mxu0
        %v455 = vadd.f32 %v344, %v454
        %v456 = vpop.f32.mrf.mxu0
        %v457 = vadd.f32 %v348, %v456
        %458 = vmatprep.mubr.f32.mxu0 0.0
        %459 = vmatmul.mubr.f32.gmra.mxu0 %v362
        %v460 = vpop.f32.mrf.mxu0
        %v461 = vadd.f32 %v344, %v460
        %v462 = vpop.f32.mrf.mxu0
        %v463 = vadd.f32 %v348, %v462
        %464 = vmatprep.mubr.f32.mxu0 0.0
        %465 = vmatmul.mubr.f32.gmra.mxu0 %v365
        %v466 = vpop.f32.mrf.mxu0
        %v467 = vadd.f32 %v344, %v466
        %v468 = vpop.f32.mrf.mxu0
        %v469 = vadd.f32 %v348, %v468
        %470 = vmatprep.mubr.f32.mxu0 0.0
        %471 = vmatmul.mubr.f32.gmra.mxu0 %v368
        %v472 = vpop.f32.mrf.mxu0
        %v473 = vadd.f32 %v344, %v472
        %v474 = vpop.f32.mrf.mxu0
        %v475 = vadd.f32 %v348, %v474
        %476 = vmatprep.mubr.f32.mxu0 0.0
        %477 = vmatmul.mubr.f32.gmra.mxu0 %v371
        %v478 = vpop.f32.mrf.mxu0
        %v479 = vadd.f32 %v344, %v478
        %v480 = vpop.f32.mrf.mxu0
        %v481 = vadd.f32 %v348, %v480
        %482 = vmatprep.mubr.f32.mxu0 0.0
        %483 = vmatmul.mubr.f32.gmra.mxu0 %v374
        %v484 = vpop.f32.mrf.mxu0
        %v485 = vadd.f32 %v344, %v484
        %v486 = vpop.f32.mrf.mxu0
        %v487 = vadd.f32 %v348, %v486
        %488 = vdwg.mxu0
        %v489 = vmul.f32 %v443, 0.5
        %v490 = vmul.f32 %v445, 0.5
        %v491 = vmul.f32 %v449, 0.5
        %v492 = vmul.f32 %v451, 0.5
        %v493 = vmul.f32 %v455, 0.5
        %v494 = vmul.f32 %v457, 0.5
        %v495 = vmul.f32 %v461, 0.5
        %v496 = vmul.f32 %v463, 0.5
        %v497 = vmul.f32 %v467, 0.5
        %v498 = vmul.f32 %v469, 0.5
        %v499 = vmul.f32 %v473, 0.5
        %v500 = vmul.f32 %v475, 0.5
        %v501 = vmul.f32 %v479, 0.5
        %v502 = vmul.f32 %v481, 0.5
        %v503 = vmul.f32 %v485, 0.5
        %v504 = vmul.f32 %v487, 0.5
        %v505 = vmul.f32 %v443, %v443
        %v506 = vmul.f32 %v445, %v445
        %v507 = vmul.f32 %v449, %v449
        %v508 = vmul.f32 %v451, %v451
        %v509 = vmul.f32 %v455, %v455
        %v510 = vmul.f32 %v457, %v457
        %v511 = vmul.f32 %v461, %v461
        %v512 = vmul.f32 %v463, %v463
        %v513 = vmul.f32 %v467, %v467
        %v514 = vmul.f32 %v469, %v469
        %v515 = vmul.f32 %v473, %v473
        %v516 = vmul.f32 %v475, %v475
        %v517 = vmul.f32 %v479, %v479
        %v518 = vmul.f32 %v481, %v481
        %v519 = vmul.f32 %v485, %v485
        %v520 = vmul.f32 %v487, %v487
        %v521 = vmul.f32 %v505, %v443
        %v522 = vmul.f32 %v506, %v445
        %v523 = vmul.f32 %v507, %v449
        %v524 = vmul.f32 %v508, %v451
        %v525 = vmul.f32 %v509, %v455
        %v526 = vmul.f32 %v510, %v457
        %v527 = vmul.f32 %v511, %v461
        %v528 = vmul.f32 %v512, %v463
        %v529 = vmul.f32 %v513, %v467
        %v530 = vmul.f32 %v514, %v469
        %v531 = vmul.f32 %v515, %v473
        %v532 = vmul.f32 %v516, %v475
        %v533 = vmul.f32 %v517, %v479
        %v534 = vmul.f32 %v518, %v481
        %v535 = vmul.f32 %v519, %v485
        %v536 = vmul.f32 %v520, %v487
        %v537 = vmul.f32 %v521, 0.044715
        %v538 = vmul.f32 %v522, 0.044715
        %v539 = vmul.f32 %v523, 0.044715
        %v540 = vmul.f32 %v524, 0.044715
        %v541 = vmul.f32 %v525, 0.044715
        %v542 = vmul.f32 %v526, 0.044715
        %v543 = vmul.f32 %v527, 0.044715
        %v544 = vmul.f32 %v528, 0.044715
        %v545 = vmul.f32 %v529, 0.044715
        %v546 = vmul.f32 %v530, 0.044715
        %v547 = vmul.f32 %v531, 0.044715
        %v548 = vmul.f32 %v532, 0.044715
        %v549 = vmul.f32 %v533, 0.044715
        %v550 = vmul.f32 %v534, 0.044715
        %v551 = vmul.f32 %v535, 0.044715
        %v552 = vmul.f32 %v536, 0.044715
        %v553 = vadd.f32 %v443, %v537
        %v554 = vadd.f32 %v445, %v538
        %v555 = vadd.f32 %v449, %v539
        %v556 = vadd.f32 %v451, %v540
        %v557 = vadd.f32 %v455, %v541
        %v558 = vadd.f32 %v457, %v542
        %v559 = vadd.f32 %v461, %v543
        %v560 = vadd.f32 %v463, %v544
        %v561 = vadd.f32 %v467, %v545
        %v562 = vadd.f32 %v469, %v546
        %v563 = vadd.f32 %v473, %v547
        %v564 = vadd.f32 %v475, %v548
        %v565 = vadd.f32 %v479, %v549
        %v566 = vadd.f32 %v481, %v550
        %v567 = vadd.f32 %v485, %v551
        %v568 = vadd.f32 %v487, %v552
        %v569 = vmul.f32 %v553, 0.7978846
        %v570 = vmul.f32 %v554, 0.7978846
        %v571 = vmul.f32 %v555, 0.7978846
        %v572 = vmul.f32 %v556, 0.7978846
        %v573 = vmul.f32 %v557, 0.7978846
        %v574 = vmul.f32 %v558, 0.7978846
        %v575 = vmul.f32 %v559, 0.7978846
        %v576 = vmul.f32 %v560, 0.7978846
        %v577 = vmul.f32 %v561, 0.7978846
        %v578 = vmul.f32 %v562, 0.7978846
        %v579 = vmul.f32 %v563, 0.7978846
        %v580 = vmul.f32 %v564, 0.7978846
        %v581 = vmul.f32 %v565, 0.7978846
        %v582 = vmul.f32 %v566, 0.7978846
        %v583 = vmul.f32 %v567, 0.7978846
        %v584 = vmul.f32 %v568, 0.7978846
        %v585 = vtanh.pop %v569
        %v586 = vtanh.pop %v570
        %v587 = vtanh.pop %v571
        %v588 = vtanh.pop %v572
        %v589 = vtanh.pop %v573
        %v590 = vtanh.pop %v574
        %v591 = vtanh.pop %v575
        %v592 = vtanh.pop %v576
        %v593 = vtanh.pop %v577
        %v594 = vtanh.pop %v578
        %v595 = vtanh.pop %v579
        %v596 = vtanh.pop %v580
        %v597 = vtanh.pop %v581
        %v598 = vtanh.pop %v582
        %v599 = vtanh.pop %v583
        %v600 = vtanh.pop %v584
        %v601 = vadd.f32 %v585, 1.0
        %v602 = vadd.f32 %v586, 1.0
        %v603 = vadd.f32 %v587, 1.0
        %v604 = vadd.f32 %v588, 1.0
        %v605 = vadd.f32 %v589, 1.0
        %v606 = vadd.f32 %v590, 1.0
        %v607 = vadd.f32 %v591, 1.0
        %v608 = vadd.f32 %v592, 1.0
        %v609 = vadd.f32 %v593, 1.0
        %v610 = vadd.f32 %v594, 1.0
        %v611 = vadd.f32 %v595, 1.0
        %v612 = vadd.f32 %v596, 1.0
        %v613 = vadd.f32 %v597, 1.0
        %v614 = vadd.f32 %v598, 1.0
        %v615 = vadd.f32 %v599, 1.0
        %v616 = vadd.f32 %v600, 1.0
        %v617 = vmul.f32 %v489, %v601
        %v618 = vmul.f32 %v490, %v602
        %v619 = vmul.f32 %v491, %v603
        %v620 = vmul.f32 %v492, %v604
        %v621 = vmul.f32 %v493, %v605
        %v622 = vmul.f32 %v494, %v606
        %v623 = vmul.f32 %v495, %v607
        %v624 = vmul.f32 %v496, %v608
        %v625 = vmul.f32 %v497, %v609
        %v626 = vmul.f32 %v498, %v610
        %v627 = vmul.f32 %v499, %v611
        %v628 = vmul.f32 %v500, %v612
        %v629 = vmul.f32 %v501, %v613
        %v630 = vmul.f32 %v502, %v614
        %v631 = vmul.f32 %v503, %v615
        %v632 = vmul.f32 %v504, %v616
        %v633 = vld [vmem:[#allocation2] sm:$0xff]
        %v634 = vld [vmem:[#allocation2 + $0x8] sm:$0xff]
        %v635 = vld [vmem:[#allocation2 + $0x10] sm:$0xff]
        %v636 = vld [vmem:[#allocation2 + $0x18] sm:$0xff]
        %v637 = vld [vmem:[#allocation2 + $0x20] sm:$0xff]
        %v638 = vld [vmem:[#allocation2 + $0x28] sm:$0xff]
        %v639 = vld [vmem:[#allocation2 + $0x30] sm:$0xff]
        %v640 = vld [vmem:[#allocation2 + $0x38] sm:$0xff]
        %v641 = vld [vmem:[#allocation3] sm:$0xff]
        %v642 = vld [vmem:[#allocation3 + $0x8] sm:$0xff]
        %v643 = vld [vmem:[#allocation3 + $0x10] sm:$0xff]
        %v644 = vld [vmem:[#allocation3 + $0x18] sm:$0xff]
        %v645 = vld [vmem:[#allocation3 + $0x20] sm:$0xff]
        %v646 = vld [vmem:[#allocation3 + $0x28] sm:$0xff]
        %v647 = vld [vmem:[#allocation3 + $0x30] sm:$0xff]
        %v648 = vld [vmem:[#allocation3 + $0x38] sm:$0xff]
        %v649 = vld [vmem:[#allocation3 + $0x40] sm:$0xff]
        %v650 = vld [vmem:[#allocation3 + $0x48] sm:$0xff]
        %v651 = vld [vmem:[#allocation3 + $0x50] sm:$0xff]
        %v652 = vld [vmem:[#allocation3 + $0x58] sm:$0xff]
        %v653 = vld [vmem:[#allocation3 + $0x60] sm:$0xff]
        %v654 = vld [vmem:[#allocation3 + $0x68] sm:$0xff]
        %v655 = vld [vmem:[#allocation3 + $0x70] sm:$0xff]
        %v656 = vld [vmem:[#allocation3 + $0x78] sm:$0xff]
        %v657 = vld [vmem:[#allocation3 + $0x80] sm:$0xff]
        %v658 = vld [vmem:[#allocation3 + $0x88] sm:$0xff]
        %v659 = vld [vmem:[#allocation3 + $0x90] sm:$0xff]
        %v660 = vld [vmem:[#allocation3 + $0x98] sm:$0xff]
        %v661 = vld [vmem:[#allocation3 + $0xa0] sm:$0xff]
        %v662 = vld [vmem:[#allocation3 + $0xa8] sm:$0xff]
        %v663 = vld [vmem:[#allocation3 + $0xb0] sm:$0xff]
        %v664 = vld [vmem:[#allocation3 + $0xb8] sm:$0xff]
        %v665 = vld [vmem:[#allocation3 + $0xc0] sm:$0xff]
        %v666 = vld [vmem:[#allocation3 + $0xc8] sm:$0xff]
        %v667 = vld [vmem:[#allocation3 + $0xd0] sm:$0xff]
        %v668 = vld [vmem:[#allocation3 + $0xd8] sm:$0xff]
        %v669 = vld [vmem:[#allocation3 + $0xe0] sm:$0xff]
        %v670 = vld [vmem:[#allocation3 + $0xe8] sm:$0xff]
        %v671 = vld [vmem:[#allocation3 + $0xf0] sm:$0xff]
        %v672 = vld [vmem:[#allocation3 + $0xf8] sm:$0xff]
        %673 = vmatprep.subr.mxu0 0.0
        %674 = vmatpush1.msra.mxu0 %v656
        %675 = vmatprep.subr.mxu0 0.0
        %676 = vmatpush1.msra.mxu0 %v655
        %677 = vmatprep.subr.mxu0 0.0
        %678 = vmatpush1.msra.mxu0 %v654
        %679 = vmatprep.subr.mxu0 0.0
        %680 = vmatpush1.msra.mxu0 %v653
        %681 = vmatprep.subr.mxu0 0.0
        %682 = vmatpush1.msra.mxu0 %v652
        %683 = vmatprep.subr.mxu0 0.0
        %684 = vmatpush1.msra.mxu0 %v651
        %685 = vmatprep.subr.mxu0 0.0
        %686 = vmatpush1.msra.mxu0 %v650
        %687 = vmatprep.subr.mxu0 0.0
        %688 = vmatpush1.msra.mxu0 %v649
        %689 = vmatprep.subr.mxu0 0.0
        %690 = vmatpush1.msra.mxu0 %v648
        %691 = vmatprep.subr.mxu0 0.0
        %692 = vmatpush1.msra.mxu0 %v647
        %693 = vmatprep.subr.mxu0 0.0
        %694 = vmatpush1.msra.mxu0 %v646
        %695 = vmatprep.subr.mxu0 0.0
        %696 = vmatpush1.msra.mxu0 %v645
        %697 = vmatprep.subr.mxu0 0.0
        %698 = vmatpush1.msra.mxu0 %v644
        %699 = vmatprep.subr.mxu0 0.0
        %700 = vmatpush1.msra.mxu0 %v643
        %701 = vmatprep.subr.mxu0 0.0
        %702 = vmatpush1.msra.mxu0 %v642
        %703 = vmatprep.subr.mxu0 0.0
        %704 = vmatpush1.msra.mxu0 %v641
        %705 = vmatprep.subr.mxu0 0.0
        %706 = vmatpush2.msra.mxu0 %v672
        %707 = vmatprep.subr.mxu0 0.0
        %708 = vmatpush2.msra.mxu0 %v671
        %709 = vmatprep.subr.mxu0 0.0
        %710 = vmatpush2.msra.mxu0 %v670
        %711 = vmatprep.subr.mxu0 0.0
        %712 = vmatpush2.msra.mxu0 %v669
        %713 = vmatprep.subr.mxu0 0.0
        %714 = vmatpush2.msra.mxu0 %v668
        %715 = vmatprep.subr.mxu0 0.0
        %716 = vmatpush2.msra.mxu0 %v667
        %717 = vmatprep.subr.mxu0 0.0
        %718 = vmatpush2.msra.mxu0 %v666
        %719 = vmatprep.subr.mxu0 0.0
        %720 = vmatpush2.msra.mxu0 %v665
        %721 = vmatprep.subr.mxu0 0.0
        %722 = vmatpush2.msra.mxu0 %v664
        %723 = vmatprep.subr.mxu0 0.0
        %724 = vmatpush2.msra.mxu0 %v663
        %725 = vmatprep.subr.mxu0 0.0
        %726 = vmatpush2.msra.mxu0 %v662
        %727 = vmatprep.subr.mxu0 0.0
        %728 = vmatpush2.msra.mxu0 %v661
        %729 = vmatprep.subr.mxu0 0.0
        %730 = vmatpush2.msra.mxu0 %v660
        %731 = vmatprep.subr.mxu0 0.0
        %732 = vmatpush2.msra.mxu0 %v659
        %733 = vmatprep.subr.mxu0 0.0
        %734 = vmatpush2.msra.mxu0 %v658
        %735 = vmatprep.subr.mxu0 0.0
        %736 = vmatpush2.msra.mxu0 %v657
        %737 = vmatprep.mubr.f32.mxu0 %v618
        %738 = vmatmul.mubr.f32.gmra.mxu0 %v617
        %v739 = vpop.f32.mrf.mxu0
        %v740 = vadd.f32 0.0, %v739
        %v741 = vpop.f32.mrf.mxu0
        %742 = vmatprep.mubr.f32.mxu0 %v620
        %743 = vmatmul.mubr.f32.gmra.mxu0 %v619
        %v744 = vpop.f32.mrf.mxu0
        %v745 = vadd.f32 0.0, %v744
        %v746 = vpop.f32.mrf.mxu0
        %747 = vmatprep.mubr.f32.mxu0 %v622
        %748 = vmatmul.mubr.f32.gmra.mxu0 %v621
        %v749 = vpop.f32.mrf.mxu0
        %v750 = vadd.f32 0.0, %v749
        %v751 = vpop.f32.mrf.mxu0
        %752 = vmatprep.mubr.f32.mxu0 %v624
        %753 = vmatmul.mubr.f32.gmra.mxu0 %v623
        %v754 = vpop.f32.mrf.mxu0
        %v755 = vadd.f32 0.0, %v754
        %v756 = vpop.f32.mrf.mxu0
        %757 = vmatprep.mubr.f32.mxu0 %v626
        %758 = vmatmul.mubr.f32.gmra.mxu0 %v625
        %v759 = vpop.f32.mrf.mxu0
        %v760 = vadd.f32 0.0, %v759
        %v761 = vpop.f32.mrf.mxu0
        %762 = vmatprep.mubr.f32.mxu0 %v628
        %763 = vmatmul.mubr.f32.gmra.mxu0 %v627
        %v764 = vpop.f32.mrf.mxu0
        %v765 = vadd.f32 0.0, %v764
        %v766 = vpop.f32.mrf.mxu0
        %767 = vmatprep.mubr.f32.mxu0 %v630
        %768 = vmatmul.mubr.f32.gmra.mxu0 %v629
        %v769 = vpop.f32.mrf.mxu0
        %v770 = vadd.f32 0.0, %v769
        %v771 = vpop.f32.mrf.mxu0
        %772 = vmatprep.mubr.f32.mxu0 %v632
        %773 = vmatmul.mubr.f32.gmra.mxu0 %v631
        %v774 = vpop.f32.mrf.mxu0
        %v775 = vadd.f32 0.0, %v774
        %v776 = vpop.f32.mrf.mxu0
        %777 = vdwg.mxu0
        %v778 = vadd.f32 %v633, %v740
        %v779 = vadd.f32 %v634, %v745
        %v780 = vadd.f32 %v635, %v750
        %v781 = vadd.f32 %v636, %v755
        %v782 = vadd.f32 %v637, %v760
        %v783 = vadd.f32 %v638, %v765
        %v784 = vadd.f32 %v639, %v770
        %v785 = vadd.f32 %v640, %v775
        %786 = vst [vmem:[#allocation2] sm:$0xff] %v778
        %787 = vst [vmem:[#allocation2 + $0x8] sm:$0xff] %v779
        %788 = vst [vmem:[#allocation2 + $0x10] sm:$0xff] %v780
        %789 = vst [vmem:[#allocation2 + $0x18] sm:$0xff] %v781
        %790 = vst [vmem:[#allocation2 + $0x20] sm:$0xff] %v782
        %791 = vst [vmem:[#allocation2 + $0x28] sm:$0xff] %v783
        %792 = vst [vmem:[#allocation2 + $0x30] sm:$0xff] %v784
        %793 = vst [vmem:[#allocation2 + $0x38] sm:$0xff] %v785
        // Predicated region
        $region49: #{tpu_custom_call.1} parent=39 // pred_check
          %p794 = pneg %p303
        $region50: #{tpu_custom_call.1} parent=39 // pred_check_branch
          %796 = sbr.rel (%p794) target = $region52
        $region51: #{tpu_custom_call.1} parent=39 // pred_region
          %v797 = vld [vmem:[#allocation2] sm:$0xff]
          %v798 = vld [vmem:[#allocation2 + $0x8] sm:$0xff]
          %v799 = vld [vmem:[#allocation2 + $0x10] sm:$0xff]
          %v800 = vld [vmem:[#allocation2 + $0x18] sm:$0xff]
          %v801 = vld [vmem:[#allocation2 + $0x20] sm:$0xff]
          %v802 = vld [vmem:[#allocation2 + $0x28] sm:$0xff]
          %v803 = vld [vmem:[#allocation2 + $0x30] sm:$0xff]
          %v804 = vld [vmem:[#allocation2 + $0x38] sm:$0xff]
          %v805 = vld [vmem:[%s4] sm:$0x1]
          %v807 = vlaneseq
          %v808 = vshrl.u32 %v807, 7
          %v809 = vsub.s32 0, %v808
          %v810 = vrot.slane %v805, %v809
          %v812 = vadd.f32 %v797, %v810
          %v813 = vadd.f32 %v798, %v810
          %v814 = vadd.f32 %v799, %v810
          %v815 = vadd.f32 %v800, %v810
          %v816 = vadd.f32 %v801, %v810
          %v817 = vadd.f32 %v802, %v810
          %v818 = vadd.f32 %v803, %v810
          %v819 = vadd.f32 %v804, %v810
          %820 = vst [vmem:[%s283] sm:$0xff] %v812
          %821 = vst [vmem:[%s283 + $0x8] sm:$0xff] %v813
          %822 = vst [vmem:[%s283 + $0x10] sm:$0xff] %v814
          %823 = vst [vmem:[%s283 + $0x18] sm:$0xff] %v815
          %824 = vst [vmem:[%s283 + $0x20] sm:$0xff] %v816
          %825 = vst [vmem:[%s283 + $0x28] sm:$0xff] %v817
          %826 = vst [vmem:[%s283 + $0x30] sm:$0xff] %v818
          %827 = vst [vmem:[%s283 + $0x38] sm:$0xff] %v819
        $region52: #{tpu_custom_call.1} parent=39 // pred_fallthru
          _
        %s828 = sand.u32 %s165, 1
        %s829 = scalar_lea.sflag [#allocation5], %s828
        %s830 = sand.u32 %s165, 1
        %s831 = smul.addr %s830, 64
        %s832 = scalar_lea.vmem [#allocation6], %s831
        // Predicated region
        $region53: #{tpu_custom_call.1} parent=39 // pred_check
          %p833 = pneg %p175
        $region54: #{tpu_custom_call.1} parent=39 // pred_check_branch
          %835 = sbr.rel (%p833) target = $region56
        $region55: #{tpu_custom_call.1} parent=39 // pred_region
          %s836 = smul.u32 8, %s24
          %s838 = ssub.s32 1024, 1024
          %839 = vsyncadd %s829, %s838
          %s840 = smul.addr %s836, 128
          %s841 = scalar_lea.hbm %s5, %s840
          %s842 = sshll.u32 %s832, 4
          %s843 = int_to_ptr.vmem [resolvable:$true] %s842
          %848 = dma.vmem_to_hbm [thread:$0]  %s843, 1024, %s841, %s829, 128, 128, 8
        $region56: #{tpu_custom_call.1} parent=39 // pred_fallthru
          _
      $region40: #{tpu_custom_call.1} parent=5 // pred_fallthru
        _
      %p849 = scmp.le.s32.totalorder 2, %s15
      // Predicated region
      $region57: #{tpu_custom_call.1} parent=5 // pred_check
        %p850 = pneg %p849
      $region58: #{tpu_custom_call.1} parent=5 // pred_check_branch
        %852 = sbr.rel (%p850) target = $region60
      $region59: #{tpu_custom_call.1} parent=5 // pred_region
        %s853 = ssub.s32 %s15, 2
        // Predicated region
        $region61: #{tpu_custom_call.1} parent=59 // pred_check
          %p854 = pneg %p181
        $region62: #{tpu_custom_call.1} parent=59 // pred_check_branch
          %856 = sbr.rel (%p854) target = $region64
        $region63: #{tpu_custom_call.1} parent=59 // pred_region
          %s857 = sand.u32 %s166, 1
          %s858 = scalar_lea.sflag [#allocation5], %s857
          %s859 = sand.u32 %s166, 1
          %s860 = smul.addr %s859, 64
          %s861 = scalar_lea.vmem [#allocation6], %s860
          %862 = dma.done %s858, 1024
        $region64: #{tpu_custom_call.1} parent=59 // pred_fallthru
          _
      $region60: #{tpu_custom_call.1} parent=5 // pred_fallthru
        _
    $region6: #{tpu_custom_call.1} parent=1 // loop_footer
      %s19 = sadd.s32 1, %s15
    $region7: #{tpu_custom_call.1} parent=1 // loop_footer_branch
      %14 = sbr.rel target = $region3
    $region8: #{tpu_custom_call.1} parent=1 // loop_exit
      _
    %863 = vsyncpa [#allocation4], 1
    %s864 = scalar_lea.sflag [#allocation4], 1
    %865 = vsyncpa %s864, 1
    %866 = vsyncpa [#allocation5], 1
    %s867 = scalar_lea.sflag [#allocation5], 1
    %868 = vsyncpa %s867, 1

</llo_original>
